<compile_context>
chip_gen: v7x
topology: tpu7x:2x2x1
jax: 0.10.0
libtpu: 0.0.40
codegen_flags: <defaults>
</compile_context>

<pallas_src>
import jax
import jax.numpy as jnp
from jax import lax
from jax.experimental import pallas as pl
from jax.experimental.pallas import tpu as pltpu


def _round_up(x, m):
    return ((x + m - 1) // m) * m


def _vmem_budgets():
    """(vmem_limit_bytes, per-step working-set budget) by chip generation."""
    try:
        vmem_cap = pltpu.get_tpu_info().vmem_capacity_bytes
    except Exception:
        vmem_cap = 64 * 1024 * 1024            # conservative: assume v7x (64 MiB / TC)
    if vmem_cap >= 100 * 1024 * 1024:          # v5e / v6e: 128 MiB per TC
        return 100 * 1024 * 1024, 72 * 1024 * 1024
    return 48 * 1024 * 1024, 28 * 1024 * 1024  # v7x: 64 MiB per TC


def _pick_tiles(n128, C, itemsize, tile_budget):
    """Pick decoupled lane-dense spatial tiles for pass 1 / pass 2."""
    # Pass 2 per-step working set (double-buffered): attn in + x in + out tiles.
    fixed2 = 2 * C * C * itemsize
    per_col2 = 4 * C * itemsize
    max2 = max(128, (tile_budget - fixed2) // per_col2)
    tile2 = max(128, (min(max2, n128) // 128) * 128)
    n_final = _round_up(n128, tile2)
    n_tiles2 = n_final // tile2

    # Pass 1 per-step working set: x in (double-buffered) + attn out + f32 acc.
    fixed1 = 2 * C * C * itemsize + 4 * C * C
    per_col1 = 2 * C * itemsize
    max1 = max(tile2, (tile_budget - fixed1) // per_col1)
    k = 1
    for cand in range(n_tiles2, 0, -1):
        if n_tiles2 % cand == 0 and cand * tile2 <= max1:
            k = cand
            break
    tile1 = k * tile2
    n_tiles1 = n_tiles2 // k
    return n_final, tile1, n_tiles1, tile2, n_tiles2


# --------------------------------------------------------------------------
# Kernels
# --------------------------------------------------------------------------

def _cam_fused_kernel(gamma_ref, x_ref, o_ref):
    """Single-pass: Gram -> softmax (gamma-folded) -> attn @ x -> residual."""
    x = x_ref[0]                                               # (C, Np), model dtype
    # energy = x @ x^T (contract spatial axis), f32 accumulation on the MXU.
    energy = lax.dot_general(
        x, x, dimension_numbers=(((1,), (1,)), ((), ())),
        preferred_element_type=jnp.float32)
    # softmax(rowmax(E) - E) == exp(rowmin - E) / sum(exp(rowmin - E)).
    e_min = jnp.min(energy, axis=-1, keepdims=True)
    p = jnp.exp(e_min - energy)
    denom = jnp.sum(p, axis=-1, keepdims=True)
    attn = (gamma_ref[0] * p) / denom                          # exact divide; gamma folded
    out = jnp.dot(attn.astype(x.dtype), x, preferred_element_type=jnp.float32)
    o_ref[0] = out.astype(o_ref.dtype) + x                     # residual in model dtype


def _cam_attention_kernel(gamma_ref, x_ref, attn_ref, acc_ref):
    """Pass 1: stream (C, tile) slabs, accumulate Gram, softmax at last tile."""
    n = pl.program_id(1)

    @pl.when(n == 0)
    def _():
        acc_ref[...] = jnp.zeros_like(acc_ref)

    x = x_ref[0]                                               # (C, tile1), model dtype
    acc_ref[...] += lax.dot_general(
        x, x, dimension_numbers=(((1,), (1,)), ((), ())),
        preferred_element_type=jnp.float32)

    @pl.when(n == pl.num_programs(1) - 1)
    def _():
        energy = acc_ref[...]                                  # (C, C) f32
        e_min = jnp.min(energy, axis=-1, keepdims=True)
        p = jnp.exp(e_min - energy)
        denom = jnp.sum(p, axis=-1, keepdims=True)
        attn = (gamma_ref[0] * p) / denom                      # exact divide; gamma folded
        attn_ref[0] = attn.astype(attn_ref.dtype)


def _cam_output_kernel(attn_ref, x_ref, o_ref):
    """Pass 2: out = (gamma-scaled attn) @ x + x, one spatial tile per step."""
    x = x_ref[0]                                               # (C, tile2), model dtype
    out = jnp.dot(attn_ref[0], x, preferred_element_type=jnp.float32)
    o_ref[0] = out.astype(o_ref.dtype) + x


# --------------------------------------------------------------------------
# Wrapper
# --------------------------------------------------------------------------

def cam_module_forward(x, gamma, *, force_two_pass=False):
    """x: (B, C, H, W); gamma: scalar. Returns gamma * (channel-attn @ x) + x."""
    B, C, H, W = x.shape
    N = H * W
    itemsize = x.dtype.itemsize
    x_flat = x.reshape(B, C, N)
    gamma_arr = jnp.asarray(gamma, dtype=jnp.float32).reshape(1)
    vmem_limit, tile_budget = _vmem_budgets()

    # Zero-pad the spatial axis to a lane-dense multiple of 128. Zero columns do
    # not change the Gram matrix and padded output columns are sliced away, so
    # padding is numerically free; it removes the unsafe whole-slab fallback.
    n128 = _round_up(N, 128)

    # ---- Fused single-pass fast path: x read from HBM once per batch. ----
    # Estimated working set: double-buffered in/out slabs + f32 matmul result
    # + (C, C) f32 temporaries.
    fused_ws = 4 * C * n128 * itemsize + 4 * C * n128 + 12 * C * C
    if not force_two_pass and fused_ws <= tile_budget:
        x_p = x_flat if n128 == N else jnp.pad(x_flat, ((0, 0), (0, 0), (0, n128 - N)))
        out_flat = pl.pallas_call(
            _cam_fused_kernel,
            out_shape=jax.ShapeDtypeStruct((B, C, n128), x.dtype),
            grid_spec=pltpu.PrefetchScalarGridSpec(
                num_scalar_prefetch=1,
                grid=(B,),
                in_specs=[pl.BlockSpec((1, C, n128), lambda b, g: (b, 0, 0))],
                out_specs=pl.BlockSpec((1, C, n128), lambda b, g: (b, 0, 0)),
            ),
            compiler_params=pltpu.CompilerParams(
                dimension_semantics=("parallel",),
                vmem_limit_bytes=vmem_limit,
            ),
        )(gamma_arr, x_p)
        if n128 != N:
            out_flat = out_flat[:, :, :N]
        return out_flat.reshape(B, C, H, W)

    # ---- Two-pass streaming path: VMEM bounded regardless of N. ----
    n_final, tile1, n_tiles1, tile2, n_tiles2 = _pick_tiles(n128, C, itemsize, tile_budget)
    x_p = x_flat if n_final == N else jnp.pad(x_flat, ((0, 0), (0, 0), (0, n_final - N)))

    # Pass 1: per-batch gamma-scaled channel-attention matrix (B, C, C).
    # TODO(synk): on v7x with B == 1 this reduction occupies a single TensorCore;
    # splitting the spatial axis across cores (partial Gram + tiny combine) would
    # roughly double pass-1 throughput there.
    attention = pl.pallas_call(
        _cam_attention_kernel,
        out_shape=jax.ShapeDtypeStruct((B, C, C), x.dtype),
        grid_spec=pltpu.PrefetchScalarGridSpec(
            num_scalar_prefetch=1,
            grid=(B, n_tiles1),
            in_specs=[pl.BlockSpec((1, C, tile1), lambda b, n, g: (b, 0, n))],
            out_specs=pl.BlockSpec((1, C, C), lambda b, n, g: (b, 0, 0)),
            scratch_shapes=[pltpu.VMEM((C, C), jnp.float32)],
        ),
        compiler_params=pltpu.CompilerParams(
            dimension_semantics=("parallel", "arbitrary"),
            vmem_limit_bytes=vmem_limit,
        ),
    )(gamma_arr, x_p)

    # Pass 2: out = (gamma-scaled attention) @ x + x; both axes independent, so
    # fully "parallel" (megacore-friendly even for B == 1).
    out_flat = pl.pallas_call(
        _cam_output_kernel,
        out_shape=jax.ShapeDtypeStruct((B, C, n_final), x.dtype),
        grid_spec=pltpu.PrefetchScalarGridSpec(
            num_scalar_prefetch=0,
            grid=(B, n_tiles2),
            in_specs=[
                pl.BlockSpec((1, C, C), lambda b, n: (b, 0, 0)),
                pl.BlockSpec((1, C, tile2), lambda b, n: (b, 0, n)),
            ],
            out_specs=pl.BlockSpec((1, C, tile2), lambda b, n: (b, 0, n)),
        ),
        compiler_params=pltpu.CompilerParams(
            dimension_semantics=("parallel", "parallel"),
            vmem_limit_bytes=vmem_limit,
        ),
    )(attention, x_p)

    if n_final != N:
        out_flat = out_flat[:, :, :N]
    return out_flat.reshape(B, C, H, W)


def cam_module_ref(x, gamma):
    """Pure-JAX f32 reference mirroring the PyTorch forward exactly."""
    B, C, H, W = x.shape
    xf = x.reshape(B, C, H * W).astype(jnp.float32)
    energy = jnp.einsum("bcn,bdn->bcd", xf, xf)
    energy_new = jnp.max(energy, axis=-1, keepdims=True) - energy
    attention = jax.nn.softmax(energy_new, axis=-1)
    out = jnp.einsum("bcd,bdn->bcn", attention, xf)
    out = out.reshape(B, C, H, W)
    return (gamma * out + x.astype(jnp.float32)).astype(x.dtype)


if __name__ == "__main__":
    key = jax.random.PRNGKey(0)
    B, C, H, W = 2, 4, 16, 16
    x_f32 = jax.random.normal(key, (B, C, H, W), dtype=jnp.float32)

    # gamma initialized to 0 in the module (Parameter(torch.zeros(1))); also
    # exercise a nonzero gamma so the attention path matters.
    for gamma in (0.0, 0.5):
        out = jax.block_until_ready(cam_module_forward(x_f32, gamma))
        ref = cam_module_ref(x_f32, gamma)
        assert out.shape == (B, C, H, W)
        err = float(jnp.max(jnp.abs(out - ref)))
        assert jnp.allclose(out, ref, atol=2e-3, rtol=2e-3), (
            f"f32 fused mismatch at gamma={gamma}: max err {err}"
        )

    # Force the two-pass streaming path so both kernels are exercised.
    out_tp = jax.block_until_ready(cam_module_forward(x_f32, 0.5, force_two_pass=True))
    ref_tp = cam_module_ref(x_f32, 0.5)
    err = float(jnp.max(jnp.abs(out_tp - ref_tp)))
    assert jnp.allclose(out_tp, ref_tp, atol=2e-3, rtol=2e-3), (
        f"f32 two-pass mismatch: max err {err}"
    )

    # Spatial size not a multiple of 128 exercises the zero-padding path.
    x_odd = jax.random.normal(jax.random.PRNGKey(1), (1, 4, 5, 7), dtype=jnp.float32)
    out_odd = jax.block_until_ready(cam_module_forward(x_odd, 0.5))
    ref_odd = cam_module_ref(x_odd, 0.5)
    err = float(jnp.max(jnp.abs(out_odd - ref_odd)))
    assert jnp.allclose(out_odd, ref_odd, atol=2e-3, rtol=2e-3), (
        f"padded-N mismatch: max err {err}"
    )

    # bf16 path: native-dtype MXU matmuls with f32 accumulation; attention is
    # stored in bf16 between passes (intentional speed trade-off) -> loose tol.
    x_bf16 = x_f32.astype(jnp.bfloat16)
    out_bf = jax.block_until_ready(cam_module_forward(x_bf16, 0.5))
    ref_bf = cam_module_ref(x_bf16, 0.5).astype(jnp.float32)
    assert out_bf.dtype == jnp.bfloat16
    assert jnp.allclose(out_bf.astype(jnp.float32), ref_bf, atol=1e-1, rtol=1e-1), (
        f"bf16 mismatch: max err {float(jnp.max(jnp.abs(out_bf.astype(jnp.float32) - ref_bf)))}"
    )

    print("KERNEL_OK")
</pallas_src>

<mosaic_0001>
module attributes {stable_mosaic.version = 11 : i64} {
  func.func @_cam_fused_kernel(%arg0: i32, %arg1: memref<1xf32, #tpu.memory_space<smem>>, %arg2: memref<1x4x256xf32, #tpu.memory_space<vmem>>, %arg3: memref<1x4x256xf32, #tpu.memory_space<vmem>>) attributes {dimension_semantics = [#tpu.dimension_semantics<parallel>], iteration_bounds = array<i64: 2>, scalar_prefetch = 1 : i64, scratch_operands = 0 : i64, tpu.core_type = #tpu.core_type<tc>, window_params = [{transform_indices = @transform_0, window_bounds = array<i64: 1, 4, 256>}, {transform_indices = @transform_1, window_bounds = array<i64: 1, 4, 256>}]} {
    %c0 = arith.constant 0 : index
    %c0_0 = arith.constant 0 : index
    %c0_1 = arith.constant 0 : index
    %0 = vector.load %arg2[%c0, %c0_0, %c0_1] : memref<1x4x256xf32, #tpu.memory_space<vmem>>, vector<1x4x256xf32>
    %1 = vector.shape_cast %0 : vector<1x4x256xf32> to vector<4x256xf32>
    %cst = arith.constant dense<0.000000e+00> : vector<4x4xf32>
    %2 = tpu.matmul %1, %1, %cst {dimension_numbers = #tpu.dot_dimension_numbers<[1], [1], [0], [0], [0, 0, 1, 0], [], []>} : vector<4x256xf32>, vector<4x256xf32>, vector<4x4xf32> -> vector<4x4xf32>
    %cst_2 = arith.constant dense<0x7F800000> : vector<4xf32>
    %3 = vector.multi_reduction <minimumf>, %2, %cst_2 [1] : vector<4x4xf32> to vector<4xf32>
    %4 = vector.shape_cast %3 : vector<4xf32> to vector<4x1xf32>
    %5 = vector.broadcast %4 : vector<4x1xf32> to vector<4x4xf32>
    %6 = arith.subf %5, %2 : vector<4x4xf32>
    %7 = math.exp %6 : vector<4x4xf32>
    %cst_3 = arith.constant dense<0.000000e+00> : vector<4xf32>
    %8 = vector.multi_reduction <add>, %7, %cst_3 [1] : vector<4x4xf32> to vector<4xf32>
    %9 = vector.shape_cast %8 : vector<4xf32> to vector<4x1xf32>
    %c0_4 = arith.constant 0 : index
    %10 = memref.load %arg1[%c0_4] : memref<1xf32, #tpu.memory_space<smem>>
    %11 = vector.broadcast %10 : f32 to vector<4x4xf32>
    %12 = arith.mulf %11, %7 : vector<4x4xf32>
    %13 = vector.broadcast %9 : vector<4x1xf32> to vector<4x4xf32>
    %14 = arith.divf %12, %13 : vector<4x4xf32>
    %cst_5 = arith.constant dense<0.000000e+00> : vector<4x256xf32>
    %15 = tpu.matmul %14, %1, %cst_5 {dimension_numbers = #tpu.dot_dimension_numbers<[1], [0], [0], [1], [0, 0, 1, 1], [], []>} : vector<4x4xf32>, vector<4x256xf32>, vector<4x256xf32> -> vector<4x256xf32>
    %16 = arith.addf %15, %1 : vector<4x256xf32>
    %c0_6 = arith.constant 0 : index
    %c0_7 = arith.constant 0 : index
    %c0_8 = arith.constant 0 : index
    %17 = vector.load %arg3[%c0_6, %c0_7, %c0_8] : memref<1x4x256xf32, #tpu.memory_space<vmem>>, vector<1x4x256xf32>
    %18 = vector.shape_cast %17 : vector<1x4x256xf32> to vector<4x256xf32>
    %19 = vector.shape_cast %16 : vector<4x256xf32> to vector<1x4x256xf32>
    tpu.vector_store %arg3[%c0_6, %c0_7, %c0_8], %19 {strides = array<i32>} : memref<1x4x256xf32, #tpu.memory_space<vmem>>, vector<1x4x256xf32>,
    return
  }
  func.func @transform_0(%arg0: i32, %arg1: memref<1xf32, #tpu.memory_space<smem>>) -> (i32, i32, i32) {
    %c0_i32 = arith.constant 0 : i32
    %c0_i32_0 = arith.constant 0 : i32
    %c0_i32_1 = arith.constant 0 : i32
    return %arg0, %c0_i32, %c0_i32_0 : i32, i32, i32
  }
  func.func @transform_1(%arg0: i32, %arg1: memref<1xf32, #tpu.memory_space<smem>>) -> (i32, i32, i32) {
    %c0_i32 = arith.constant 0 : i32
    %c0_i32_0 = arith.constant 0 : i32
    %c0_i32_1 = arith.constant 0 : i32
    return %arg0, %c0_i32, %c0_i32_0 : i32, i32, i32
  }
}

</mosaic_0001>

<llo_original>
// kernel: tpu_custom_call.1
$region0: #{tpu_custom_call.1}
  #allocation0 [shape = 'u32[]', space=smem, size = 0x4, offset = 0x4, fixed_abs, tag = 'smem constant byte address 0x4 - core index']
  #allocation1 [shape = 'u32[144,128]{1,0:T(1,128)}', space=vmem, size = 0x12000, scoped, tag = 'internal scratch']
  #allocation2 [shape = 's32[1]{0}', space=sflag, size = 0x4, scoped, tag = 'scoped memory for tpu_custom_call.1']
  #allocation3 [shape = 'f32[1]{0:T(128)S(6)}', space=smem, size = 0x200, scoped, tag = 'prefetched SMEM operand 0']
  %s0 = inlined_call_operand.<no memory space> [shape: f32[1], index: 0, kind: input, shape index: {}]
  %s1 = inlined_call_operand.hbm [shape: f32[2,4,256], index: 1, kind: input, shape index: {}]
  %s2 = inlined_call_operand.hbm [shape: f32[2,4,256], index: 2, kind: output, shape index: {}]
  %s3 = sld [smem:[#allocation0]]
  $region41: #{tpu_custom_call.1} parent=0
    _
  %s5 = ssub.s32 1, %s3
  %s6 = scalar_select 0, %s5, %s3
  %7 = sst [smem:[#allocation3]] %s0
  $region1: #{tpu_custom_call.1} parent=0
    #allocation4 [shape = 'u8[8192]{0}', space=vmem, size = 0x2000, scoped, tag = 'input window, operand 1']
    #allocation5 [shape = 's32[2]{0}', space=sflag, size = 0x8, scoped, tag = 'scoped memory for tpu_custom_call.1']
    #allocation6 [shape = 's32[2]{0}', space=sflag, size = 0x8, scoped, tag = 'scoped memory for tpu_custom_call.1']
    #allocation7 [shape = 'u8[8192]{0}', space=vmem, size = 0x2000, scoped, tag = 'output window, operand 0']
    %8 = vsyncpa [#allocation5], 0
    %s9 = scalar_lea.sflag [#allocation5], 1
    %10 = vsyncpa %s9, 0
    %11 = vsyncpa [#allocation6], 0
    %s12 = scalar_lea.sflag [#allocation6], 1
    %13 = vsyncpa %s12, 0
    loop: start=0, step=1, limit=4
    $region2: #{tpu_custom_call.1} parent=1 // loop_pre_header
      _
    $region3: #{tpu_custom_call.1} parent=1 // loop_header
      %s15 = sphi 0, %s19
      %p16 = scmp.ge.s32.totalorder %s15, 4
      %s25 = sphi 0, %s27
      %s28 = sphi 0, %s25
      %s29 = sphi 0, %s28
      %s45 = sphi 0, %s29
      %s51 = sphi 0, %s53
      %s54 = sphi 0, %s51
      %s55 = sphi 0, %s54
      %s71 = sphi 0, %s55
    $region4: #{tpu_custom_call.1} parent=1 // loop_header_branch
      %18 = sbr.rel (%p16) target = $region8
    $region5: #{tpu_custom_call.1} parent=1 // loop_body
      %s20 = ssub.s32 %s15, 1
      %s21 = ssub.s32 %s15, 2
      %s22 = sadd.s32 %s15, 1
      %s23 = ssub.s32 %s15, %s22
      %p24 = scmp.eq.s32.totalorder %s23, 0
      %s26 = sadd.s32 %s25, 1
      %s27 = scalar_select %p24, %s25, %s26
      %p30 = pneg %p24
      %p31 = scmp.eq.s32.totalorder %s15, 1
      %p32 = por %p30, %p31
      %p33 = scmp.ne.s32.totalorder %s25, %s28
      %p34 = scmp.eq.s32.totalorder %s15, 0
      %p35 = por %p33, %p34
      %p36 = scmp.ne.s32.totalorder %s25, %s28
      %p37 = scmp.eq.s32.totalorder %s20, 1
      %p38 = por %p36, %p37
      %p39 = scmp.ne.s32.totalorder %s28, %s29
      %p40 = scmp.eq.s32.totalorder %s20, 0
      %p41 = por %p39, %p40
      %p42 = scmp.ne.s32.totalorder %s28, %s29
      %p43 = scmp.eq.s32.totalorder %s21, 1
      %p44 = por %p42, %p43
      %p46 = scmp.ne.s32.totalorder %s29, %s45
      %p47 = scmp.eq.s32.totalorder %s21, 0
      %p48 = por %p46, %p47
      %s49 = ssub.s32 %s15, %s22
      %p50 = scmp.eq.s32.totalorder %s49, 0
      %s52 = sadd.s32 %s51, 1
      %s53 = scalar_select %p50, %s51, %s52
      %p56 = pneg %p50
      %p57 = scmp.eq.s32.totalorder %s15, 1
      %p58 = por %p56, %p57
      %p59 = scmp.ne.s32.totalorder %s51, %s54
      %p60 = scmp.eq.s32.totalorder %s15, 0
      %p61 = por %p59, %p60
      %p62 = scmp.ne.s32.totalorder %s51, %s54
      %p63 = scmp.eq.s32.totalorder %s20, 1
      %p64 = por %p62, %p63
      %p65 = scmp.ne.s32.totalorder %s54, %s55
      %p66 = scmp.eq.s32.totalorder %s20, 0
      %p67 = por %p65, %p66
      %p68 = scmp.ne.s32.totalorder %s54, %s55
      %p69 = scmp.eq.s32.totalorder %s21, 1
      %p70 = por %p68, %p69
      %p72 = scmp.ne.s32.totalorder %s55, %s71
      %p73 = scmp.eq.s32.totalorder %s21, 0
      %p74 = por %p72, %p73
      %p75 = scmp.le.s32.totalorder 1, %s15
      %p76 = scmp.lt.s32.totalorder %s15, 3
      %p77 = pnand %p75, %p76
      %p78 = pneg %p77
      // Predicated region
      $region9: #{tpu_custom_call.1} parent=5 // pred_check
        _
      $region10: #{tpu_custom_call.1} parent=5 // pred_check_branch
        %80 = sbr.rel (%p77) target = $region12
      $region11: #{tpu_custom_call.1} parent=5 // pred_region
        %s81 = ssub.s32 %s15, 1
      $region12: #{tpu_custom_call.1} parent=5 // pred_fallthru
        _
      %p82 = scmp.lt.s32.totalorder %s15, 2
      // Predicated region
      $region13: #{tpu_custom_call.1} parent=5 // pred_check
        %p83 = pneg %p82
      $region14: #{tpu_custom_call.1} parent=5 // pred_check_branch
        %85 = sbr.rel (%p83) target = $region16
      $region15: #{tpu_custom_call.1} parent=5 // pred_region
        // Predicated region
        $region17: #{tpu_custom_call.1} parent=15 // pred_check
          %p86 = pneg %p35
        $region18: #{tpu_custom_call.1} parent=15 // pred_check_branch
          %88 = sbr.rel (%p86) target = $region20
        $region19: #{tpu_custom_call.1} parent=15 // pred_region
          %s89 = sand.u32 %s25, 1
          %s90 = scalar_lea.sflag [#allocation5], %s89
          %s91 = sand.u32 %s25, 1
          %s92 = smul.addr %s91, 8
          %s93 = scalar_lea.vmem [#allocation4], %s92
          %s95 = ssub.s32 128, 128
          %96 = vsyncadd %s90, %s95
          %s97 = smul.addr %s15, 2
          %s98 = smul.addr %s97, 64
          %s99 = scalar_lea.hbm %s1, %s98
          %s101 = sshll.u32 %s93, 4
          %s102 = int_to_ptr.vmem [resolvable:$true] %s101
          %104 = dma.hbm_to_vmem [thread:$0]  %s99, 128, %s102, %s90
        $region20: #{tpu_custom_call.1} parent=15 // pred_fallthru
          _
      $region16: #{tpu_custom_call.1} parent=5 // pred_fallthru
        _
      %p105 = scmp.le.s32.totalorder 1, %s15
      %p106 = scmp.lt.s32.totalorder %s15, 3
      %p107 = pnand %p105, %p106
      %p108 = pneg %p107
      // Predicated region
      $region21: #{tpu_custom_call.1} parent=5 // pred_check
        _
      $region22: #{tpu_custom_call.1} parent=5 // pred_check_branch
        %110 = sbr.rel (%p107) target = $region24
      $region23: #{tpu_custom_call.1} parent=5 // pred_region
        %s111 = ssub.s32 %s15, 1
        %s112 = sand.u32 %s28, 1
        %s113 = scalar_lea.sflag [#allocation5], %s112
        %s114 = sand.u32 %s28, 1
        %s115 = smul.addr %s114, 8
        %s116 = scalar_lea.vmem [#allocation4], %s115
        // Predicated region
        $region25: #{tpu_custom_call.1} parent=23 // pred_check
          %p117 = pneg %p41
        $region26: #{tpu_custom_call.1} parent=23 // pred_check_branch
          %119 = sbr.rel (%p117) target = $region28
        $region27: #{tpu_custom_call.1} parent=23 // pred_region
          %120 = dma.done %s113, 128
        $region28: #{tpu_custom_call.1} parent=23 // pred_fallthru
          _
        %s121 = sand.u32 %s28, 1
        %s122 = scalar_lea.sflag [#allocation5], %s121
        %s123 = sand.u32 %s28, 1
        %s124 = smul.addr %s123, 8
        %s125 = scalar_lea.vmem [#allocation4], %s124
        %p126 = pneg %p41
        %p127 = pneg %p38
        %p128 = pneg %p67
        %p129 = pneg %p64
        %s130 = sand.u32 %s54, 1
        %s131 = scalar_lea.sflag [#allocation6], %s130
        %s132 = sand.u32 %s54, 1
        %s133 = smul.addr %s132, 8
        %s134 = scalar_lea.vmem [#allocation7], %s133
        %v135 = vld [vmem:[%s116] sm:$0xff]
        %v137 = vcombine.high %v135, %v135
        %139 = vmatprep.subr.mxu0 %v137
        %140 = vmatpush1.xpose.msra.mxu0 %v135
        %141 = vmatprep.subr.mxu0 0.0
        %142 = vmatpush1.xpose.msra.mxu0 0.0
        %143 = vmatprep.subr.mxu0 0.0
        %144 = vmatpush1.xpose.msra.mxu0 0.0
        %145 = vmatprep.subr.mxu0 0.0
        %146 = vmatpush1.xpose.msra.mxu0 0.0
        %147 = vmatprep.subr.mxu0 0.0
        %148 = vmatpush1.xpose.msra.mxu0 0.0
        %149 = vmatprep.subr.mxu0 0.0
        %150 = vmatpush1.xpose.msra.mxu0 0.0
        %151 = vmatprep.subr.mxu0 0.0
        %152 = vmatpush1.xpose.msra.mxu0 0.0
        %153 = vmatprep.subr.mxu0 0.0
        %154 = vmatpush1.xpose.msra.mxu0 0.0
        %155 = vmatprep.subr.mxu0 0.0
        %156 = vmatpush1.xpose.msra.mxu0 0.0
        %157 = vmatprep.subr.mxu0 0.0
        %158 = vmatpush1.xpose.msra.mxu0 0.0
        %159 = vmatprep.subr.mxu0 0.0
        %160 = vmatpush1.xpose.msra.mxu0 0.0
        %161 = vmatprep.subr.mxu0 0.0
        %162 = vmatpush1.xpose.msra.mxu0 0.0
        %163 = vmatprep.subr.mxu0 0.0
        %164 = vmatpush1.xpose.msra.mxu0 0.0
        %165 = vmatprep.subr.mxu0 0.0
        %166 = vmatpush1.xpose.msra.mxu0 0.0
        %167 = vmatprep.subr.mxu0 0.0
        %168 = vmatpush1.xpose.msra.mxu0 0.0
        %169 = vmatprep.subr.mxu0 0.0
        %170 = vmatpush1.xpose.msra.mxu0 0.0
        %171 = vmatprep.subr.mxu0 0.0
        %172 = vmatpush1.xpose.msra.mxu0 0.0
        %173 = vmatprep.subr.mxu0 0.0
        %174 = vmatpush1.xpose.msra.mxu0 0.0
        %175 = vmatprep.subr.mxu0 0.0
        %176 = vmatpush1.xpose.msra.mxu0 0.0
        %177 = vmatprep.subr.mxu0 0.0
        %178 = vmatpush1.xpose.msra.mxu0 0.0
        %179 = vmatprep.subr.mxu0 0.0
        %180 = vmatpush1.xpose.msra.mxu0 0.0
        %181 = vmatprep.subr.mxu0 0.0
        %182 = vmatpush1.xpose.msra.mxu0 0.0
        %183 = vmatprep.subr.mxu0 0.0
        %184 = vmatpush1.xpose.msra.mxu0 0.0
        %185 = vmatprep.subr.mxu0 0.0
        %186 = vmatpush1.xpose.msra.mxu0 0.0
        %187 = vmatprep.subr.mxu0 0.0
        %188 = vmatpush1.xpose.msra.mxu0 0.0
        %189 = vmatprep.subr.mxu0 0.0
        %190 = vmatpush1.xpose.msra.mxu0 0.0
        %191 = vmatprep.subr.mxu0 0.0
        %192 = vmatpush1.xpose.msra.mxu0 0.0
        %193 = vmatprep.subr.mxu0 0.0
        %194 = vmatpush1.xpose.msra.mxu0 0.0
        %195 = vmatprep.subr.mxu0 0.0
        %196 = vmatpush1.xpose.msra.mxu0 0.0
        %197 = vmatprep.subr.mxu0 0.0
        %198 = vmatpush1.xpose.msra.mxu0 0.0
        %199 = vmatprep.subr.mxu0 0.0
        %200 = vmatpush1.xpose.msra.mxu0 0.0
        %201 = vmatprep.subr.mxu0 0.0
        %202 = vmatpush1.xpose.msra.mxu0 0.0
        %203 = vmatprep.mubr.f32.mxu0 %v137
        %204 = vmatmul.mubr.f32.gmra.mrb[0].mxu0 %v135
        %v205 = vpop.f32.mrb[0].mxu0
        %v206 = vadd.f32 0.0, %v205
        %v207 = vpop.f32.mrb[0].mxu0
        %208 = vdwg.mxu0
        %vm209 = vcmask 27648
        %v210 = vsel %vm209, %v206, inf
        %211 = vmin.xlane.f32.xlu0 %v210
        %v212 = vpop.xlane.xlu0 %211
        %v213 = vsub.f32 %v212, %v206
        %v214 = vmul.f32 %v213, 1.442695
        %v215 = vpow.pop %v214
        %v216 = vsel %vm209, %v215, 0.0
        %217 = vadd.xlane.f32.xlu0 %v216
        %v218 = vpop.xlane.xlu0 %217
        %s219 = sld [smem:[#allocation3]]
        %v220 = vstv %s219
        %v221 = vmul.f32 %v220, %v215
        %v222 = vrcp.pop %v218
        %v223 = vmul.f32 %v221, %v222
        %vm224 = vcmask 31744
        %v226 = vsel %vm224, %v223, 0
        %vm228 = vcmask 1043456
        %v229 = vsel %vm228, %v135, 0
        %v231 = vsel %vm228, %v137, 0
        %233 = vmatprep.subr.mxu0 %v231
        %234 = vmatpush1.msra.mxu0 %v229
        %235 = vmatprep.subr.mxu0 0.0
        %236 = vmatpush1.msra.mxu0 0.0
        %237 = vmatprep.subr.mxu0 0.0
        %238 = vmatpush1.msra.mxu0 0.0
        %239 = vmatprep.subr.mxu0 0.0
        %240 = vmatpush1.msra.mxu0 0.0
        %241 = vmatprep.subr.mxu0 0.0
        %242 = vmatpush1.msra.mxu0 0.0
        %243 = vmatprep.subr.mxu0 0.0
        %244 = vmatpush1.msra.mxu0 0.0
        %245 = vmatprep.subr.mxu0 0.0
        %246 = vmatpush1.msra.mxu0 0.0
        %247 = vmatprep.subr.mxu0 0.0
        %248 = vmatpush1.msra.mxu0 0.0
        %249 = vmatprep.subr.mxu0 0.0
        %250 = vmatpush1.msra.mxu0 0.0
        %251 = vmatprep.subr.mxu0 0.0
        %252 = vmatpush1.msra.mxu0 0.0
        %253 = vmatprep.subr.mxu0 0.0
        %254 = vmatpush1.msra.mxu0 0.0
        %255 = vmatprep.subr.mxu0 0.0
        %256 = vmatpush1.msra.mxu0 0.0
        %257 = vmatprep.subr.mxu0 0.0
        %258 = vmatpush1.msra.mxu0 0.0
        %259 = vmatprep.subr.mxu0 0.0
        %260 = vmatpush1.msra.mxu0 0.0
        %261 = vmatprep.subr.mxu0 0.0
        %262 = vmatpush1.msra.mxu0 0.0
        %263 = vmatprep.subr.mxu0 0.0
        %264 = vmatpush1.msra.mxu0 0.0
        %265 = vmatprep.subr.mxu0 0.0
        %266 = vmatpush1.msra.mxu0 0.0
        %267 = vmatprep.subr.mxu0 0.0
        %268 = vmatpush1.msra.mxu0 0.0
        %269 = vmatprep.subr.mxu0 0.0
        %270 = vmatpush1.msra.mxu0 0.0
        %271 = vmatprep.subr.mxu0 0.0
        %272 = vmatpush1.msra.mxu0 0.0
        %273 = vmatprep.subr.mxu0 0.0
        %274 = vmatpush1.msra.mxu0 0.0
        %275 = vmatprep.subr.mxu0 0.0
        %276 = vmatpush1.msra.mxu0 0.0
        %277 = vmatprep.subr.mxu0 0.0
        %278 = vmatpush1.msra.mxu0 0.0
        %279 = vmatprep.subr.mxu0 0.0
        %280 = vmatpush1.msra.mxu0 0.0
        %281 = vmatprep.subr.mxu0 0.0
        %282 = vmatpush1.msra.mxu0 0.0
        %283 = vmatprep.subr.mxu0 0.0
        %284 = vmatpush1.msra.mxu0 0.0
        %285 = vmatprep.subr.mxu0 0.0
        %286 = vmatpush1.msra.mxu0 0.0
        %287 = vmatprep.subr.mxu0 0.0
        %288 = vmatpush1.msra.mxu0 0.0
        %289 = vmatprep.subr.mxu0 0.0
        %290 = vmatpush1.msra.mxu0 0.0
        %291 = vmatprep.subr.mxu0 0.0
        %292 = vmatpush1.msra.mxu0 0.0
        %293 = vmatprep.subr.mxu0 0.0
        %294 = vmatpush1.msra.mxu0 0.0
        %295 = vmatprep.subr.mxu0 0.0
        %296 = vmatpush1.msra.mxu0 0.0
        %297 = vmatprep.mubr.f32.mxu0 0.0
        %298 = vmatmul.mubr.f32.gmra.mrb[0].mxu0 %v226
        %v299 = vpop.f32.mrb[0].mxu0
        %v300 = vadd.f32 %v135, %v299
        %v301 = vpop.f32.mrb[0].mxu0
        %v302 = vadd.f32 %v137, %v301
        %303 = vdwg.mxu0
        %v306 = vcombine.low %v300, %v302
        %308 = vst [vmem:[%s134] sm:$0xff] %v306
        %s309 = sand.u32 %s54, 1
        %s310 = scalar_lea.sflag [#allocation6], %s309
        %s311 = sand.u32 %s54, 1
        %s312 = smul.addr %s311, 8
        %s313 = scalar_lea.vmem [#allocation7], %s312
        // Predicated region
        $region29: #{tpu_custom_call.1} parent=23 // pred_check
          %p314 = pneg %p64
        $region30: #{tpu_custom_call.1} parent=23 // pred_check_branch
          %316 = sbr.rel (%p314) target = $region32
        $region31: #{tpu_custom_call.1} parent=23 // pred_region
          %s318 = ssub.s32 128, 128
          %319 = vsyncadd %s310, %s318
          %s320 = smul.addr %s20, 2
          %s321 = smul.addr %s320, 64
          %s322 = scalar_lea.hbm %s2, %s321
          %s324 = sshll.u32 %s313, 4
          %s325 = int_to_ptr.vmem [resolvable:$true] %s324
          %327 = dma.vmem_to_hbm [thread:$0]  %s325, 128, %s322, %s310
        $region32: #{tpu_custom_call.1} parent=23 // pred_fallthru
          _
      $region24: #{tpu_custom_call.1} parent=5 // pred_fallthru
        _
      %p328 = scmp.le.s32.totalorder 2, %s15
      // Predicated region
      $region33: #{tpu_custom_call.1} parent=5 // pred_check
        %p329 = pneg %p328
      $region34: #{tpu_custom_call.1} parent=5 // pred_check_branch
        %331 = sbr.rel (%p329) target = $region36
      $region35: #{tpu_custom_call.1} parent=5 // pred_region
        %s332 = ssub.s32 %s15, 2
        // Predicated region
        $region37: #{tpu_custom_call.1} parent=35 // pred_check
          %p333 = pneg %p70
        $region38: #{tpu_custom_call.1} parent=35 // pred_check_branch
          %335 = sbr.rel (%p333) target = $region40
        $region39: #{tpu_custom_call.1} parent=35 // pred_region
          %s336 = sand.u32 %s55, 1
          %s337 = scalar_lea.sflag [#allocation6], %s336
          %s338 = sand.u32 %s55, 1
          %s339 = smul.addr %s338, 8
          %s340 = scalar_lea.vmem [#allocation7], %s339
          %341 = dma.done %s337, 128
        $region40: #{tpu_custom_call.1} parent=35 // pred_fallthru
          _
      $region36: #{tpu_custom_call.1} parent=5 // pred_fallthru
        _
    $region6: #{tpu_custom_call.1} parent=1 // loop_footer
      %s19 = sadd.s32 1, %s15
    $region7: #{tpu_custom_call.1} parent=1 // loop_footer_branch
      %14 = sbr.rel target = $region3
    $region8: #{tpu_custom_call.1} parent=1 // loop_exit
      _
    %342 = vsyncpa [#allocation5], 1
    %s343 = scalar_lea.sflag [#allocation5], 1
    %344 = vsyncpa %s343, 1
    %345 = vsyncpa [#allocation6], 1
    %s346 = scalar_lea.sflag [#allocation6], 1
    %347 = vsyncpa %s346, 1

</llo_original>
